<compile_context>
chip_gen: v7x
topology: tpu7x:2x2x1
jax: 0.10.0
libtpu: 0.0.40
codegen_flags: <defaults>
</compile_context>

<pallas_src>
import numpy as np
import jax
import jax.numpy as jnp
from jax.experimental import pallas as pl
from jax.experimental.pallas import tpu as pltpu


def rnn_cls_kernel(x_ref, w_ih_ref, w_hh_ref, b_ref, w_cls_ref, b_cls_ref,
                   out_ref, h_all_ref):
    """Fused single-layer tanh RNN + deferred flattened Linear classifier.

    x_ref:     (T*Bp, E)   time-major inputs flattened over (t, b)   (VMEM)
    w_ih_ref:  (E, Hp)     == PyTorch weight_ih_l0.T, zero-padded to 128 lanes
    w_hh_ref:  (Hp, Hp)    == PyTorch weight_hh_l0.T, zero-padded
    b_ref:     (1, Hp)     == bias_ih_l0 + bias_hh_l0, zero-padded
    w_cls_ref: (T*Hp, Cp)  == classifier.weight.T scattered into padded layout
    b_cls_ref: (1, Cp)     zero-padded classifier bias
    out_ref:   (Bp, Cp)    padded logits (lane-dense output slab)
    h_all_ref: (Bp, T*Hp)  VMEM scratch holding all hidden states
    """
    Bp, _Cp = out_ref.shape
    TB, _E = x_ref.shape
    T = TB // Bp
    Hp = w_hh_ref.shape[0]

    # Hoisted input projection + fused bias: one MXU matmul over all timesteps.
    u = (jnp.dot(x_ref[...], w_ih_ref[...], preferred_element_type=jnp.float32)
         + b_ref[...])                                        # (T*Bp, Hp)

    w_hh = w_hh_ref[...]                                      # hoisted load

    # Serial recurrence: only h @ W_hh (MXU) + tanh (EUP) on the h->h chain.
    # Padded hidden lanes stay exactly zero (u pad-cols = 0, W_hh pad-cols = 0).
    # TODO(synk): for large T/H switch to lax.fori_loop(unroll=k) to bound vreg
    # live ranges; T=8, Hp=128 here so a static unrolled loop is fine.
    h = jnp.zeros((Bp, Hp), jnp.float32)                      # h_0 = 0 (hidden=None)
    for t in range(T):
        h = jnp.tanh(u[t * Bp:(t + 1) * Bp, :]
                     + jnp.dot(h, w_hh, preferred_element_type=jnp.float32))
        h_all_ref[:, t * Hp:(t + 1) * Hp] = h                 # 128-lane aligned vst

    # Deferred classifier: single lane-dense matmul, K = T*Hp.
    logits = (jnp.dot(h_all_ref[...], w_cls_ref[...],
                      preferred_element_type=jnp.float32)
              + b_cls_ref[...])                               # (Bp, Cp)
    out_ref[...] = logits.astype(out_ref.dtype)


def init_params(key, embedding_num, hidden_num, class_num, max_len):
    """Deterministic init mirroring PyTorch's default U(-1/sqrt(fan), 1/sqrt(fan)),
    stored pre-transposed and pre-padded for the kernel's lane-dense layout."""
    k = jax.random.split(key, 6)
    s = 1.0 / np.sqrt(hidden_num)
    w_ih = jax.random.uniform(k[0], (hidden_num, embedding_num), jnp.float32, -s, s)
    w_hh = jax.random.uniform(k[1], (hidden_num, hidden_num), jnp.float32, -s, s)
    b_ih = jax.random.uniform(k[2], (hidden_num,), jnp.float32, -s, s)
    b_hh = jax.random.uniform(k[3], (hidden_num,), jnp.float32, -s, s)
    s2 = 1.0 / np.sqrt(max_len * hidden_num)
    w_cls = jax.random.uniform(k[4], (class_num, max_len * hidden_num),
                               jnp.float32, -s2, s2)
    b_cls = jax.random.uniform(k[5], (class_num,), jnp.float32, -s2, s2)

    h_pad = ((hidden_num + 127) // 128) * 128                 # lane-dense hidden
    c_pad = ((class_num + 127) // 128) * 128                  # lane-dense classes

    # W_ih^T -> (E, Hp), W_hh^T -> (Hp, Hp), fused bias -> (1, Hp); all zero-pad.
    w_ih_pad = jnp.zeros((embedding_num, h_pad), jnp.float32)
    w_ih_pad = w_ih_pad.at[:, :hidden_num].set(w_ih.T)
    w_hh_pad = jnp.zeros((h_pad, h_pad), jnp.float32)
    w_hh_pad = w_hh_pad.at[:hidden_num, :hidden_num].set(w_hh.T)
    b_pad = jnp.zeros((1, h_pad), jnp.float32)
    b_pad = b_pad.at[0, :hidden_num].set(b_ih + b_hh)

    # classifier.weight.T (T*H, C) scattered into (T*Hp, Cp): row t*Hp + j holds
    # original row t*H + j for j < H, zero otherwise (padded hidden lanes are 0).
    w_cls_pad = jnp.zeros((max_len, h_pad, c_pad), jnp.float32)
    w_cls_pad = w_cls_pad.at[:, :hidden_num, :class_num].set(
        w_cls.T.reshape(max_len, hidden_num, class_num))
    w_cls_pad = w_cls_pad.reshape(max_len * h_pad, c_pad)
    b_cls_pad = jnp.zeros((1, c_pad), jnp.float32).at[0, :class_num].set(b_cls)

    return dict(
        w_ih_pad=w_ih_pad,                                    # (E, Hp)
        w_hh_pad=w_hh_pad,                                    # (Hp, Hp)
        b_pad=b_pad,                                          # (1, Hp)
        w_cls_pad=w_cls_pad,                                  # (T*Hp, Cp)
        b_cls_pad=b_cls_pad,                                  # (1, Cp)
        class_num=class_num,
        hidden_num=hidden_num,
    )


def rnn_model_forward(text_embedding, params, labels=None):
    """Mirrors RNNModel.forward: returns (loss, logits, pre) if labels given,
    else (logits, pre)."""
    B, T, E = text_embedding.shape
    Hp = params["w_hh_pad"].shape[0]
    C = params["class_num"]
    Cp = params["b_cls_pad"].shape[-1]
    Bp = ((B + 7) // 8) * 8                                   # sublane-aligned batch

    # batch_first (B,T,E) -> time-major (T,Bp,E) -> (T*Bp, E) so the input
    # projection is one batched MXU matmul and per-step slices are static,
    # sublane-aligned row windows.
    x_tm = jnp.transpose(text_embedding, (1, 0, 2))
    if Bp != B:
        x_tm = jnp.pad(x_tm, ((0, 0), (0, Bp - B), (0, 0)))
    x_flat = x_tm.reshape(T * Bp, E)

    flops = (2 * T * Bp * E * Hp            # input projection
             + 2 * T * Bp * Hp * Hp         # recurrence
             + 2 * Bp * (T * Hp) * Cp)      # classifier
    bytes_accessed = 4 * (x_flat.size + params["w_ih_pad"].size
                          + params["w_hh_pad"].size + params["b_pad"].size
                          + params["w_cls_pad"].size + params["b_cls_pad"].size
                          + Bp * Cp)

    logits_pad = pl.pallas_call(
        rnn_cls_kernel,
        out_shape=jax.ShapeDtypeStruct((Bp, Cp), jnp.float32),
        in_specs=[pl.BlockSpec(memory_space=pltpu.MemorySpace.VMEM)] * 6,
        out_specs=pl.BlockSpec(memory_space=pltpu.MemorySpace.VMEM),
        scratch_shapes=[pltpu.VMEM((Bp, T * Hp), jnp.float32)],
        cost_estimate=pl.CostEstimate(
            flops=flops,
            transcendentals=T * Bp * Hp,
            bytes_accessed=bytes_accessed,
        ),
    )(
        x_flat,
        params["w_ih_pad"],
        params["w_hh_pad"],
        params["b_pad"],
        params["w_cls_pad"],
        params["b_cls_pad"],
    )

    logits = logits_pad[:B, :C]                               # drop batch/class padding

    # self.pre = argmax(p, dim=-1)
    # TODO(synk): .detach().cpu().numpy().tolist() is a host-side side effect; argmax is computed here.
    pre = jnp.argmax(logits, axis=-1)

    if labels is not None:
        # nn.CrossEntropyLoss (mean over batch) on tiny (B, C) logits — plain-JAX glue.
        logz = jax.nn.logsumexp(logits, axis=-1)
        true_logit = jnp.take_along_axis(logits, labels[:, None], axis=-1)[:, 0]
        loss = jnp.mean(logz - true_logit)
        return loss, logits, pre
    return logits, pre


if __name__ == "__main__":
    B, T, E, H, C = 2, 8, 16, 32, 4  # batch, max_len, embedding_num, hidden_num, class_num

    key = jax.random.PRNGKey(0)
    kx, kl, kp = jax.random.split(key, 3)

    text_embedding = jax.random.normal(kx, (B, T, E), jnp.float32)
    labels = jax.random.randint(kl, (B,), 0, C)
    params = init_params(kp, E, H, C, T)

    loss, logits, pre = rnn_model_forward(text_embedding, params, labels)
    jax.block_until_ready((loss, logits, pre))
    print("KERNEL_OK")
</pallas_src>

<mosaic_0001>
module attributes {stable_mosaic.version = 11 : i64} {
  func.func @rnn_cls_kernel(%arg0: memref<64x16xf32, #tpu.memory_space<vmem>>, %arg1: memref<16x128xf32, #tpu.memory_space<vmem>>, %arg2: memref<128x128xf32, #tpu.memory_space<vmem>>, %arg3: memref<1x128xf32, #tpu.memory_space<vmem>>, %arg4: memref<1024x128xf32, #tpu.memory_space<vmem>>, %arg5: memref<1x128xf32, #tpu.memory_space<vmem>>, %arg6: memref<8x128xf32, #tpu.memory_space<vmem>>, %arg7: memref<8x1024xf32, #tpu.memory_space<vmem>>) attributes {dimension_semantics = [], scalar_prefetch = 0 : i64, scratch_operands = 1 : i64, tpu.core_type = #tpu.core_type<tc>} {
    %c0 = arith.constant 0 : index
    %c0_0 = arith.constant 0 : index
    %0 = vector.load %arg0[%c0, %c0_0] : memref<64x16xf32, #tpu.memory_space<vmem>>, vector<64x16xf32>
    %c0_1 = arith.constant 0 : index
    %c0_2 = arith.constant 0 : index
    %1 = vector.load %arg1[%c0_1, %c0_2] : memref<16x128xf32, #tpu.memory_space<vmem>>, vector<16x128xf32>
    %cst = arith.constant dense<0.000000e+00> : vector<64x128xf32>
    %2 = tpu.matmul %0, %1, %cst {dimension_numbers = #tpu.dot_dimension_numbers<[1], [0], [0], [1], [0, 0, 1, 1], [], []>} : vector<64x16xf32>, vector<16x128xf32>, vector<64x128xf32> -> vector<64x128xf32>
    %c0_3 = arith.constant 0 : index
    %c0_4 = arith.constant 0 : index
    %3 = vector.load %arg3[%c0_3, %c0_4] : memref<1x128xf32, #tpu.memory_space<vmem>>, vector<1x128xf32>
    %4 = vector.broadcast %3 : vector<1x128xf32> to vector<64x128xf32>
    %5 = arith.addf %2, %4 : vector<64x128xf32>
    %c0_5 = arith.constant 0 : index
    %c0_6 = arith.constant 0 : index
    %6 = vector.load %arg2[%c0_5, %c0_6] : memref<128x128xf32, #tpu.memory_space<vmem>>, vector<128x128xf32>
    %cst_7 = arith.constant 0.000000e+00 : f32
    %7 = vector.broadcast %cst_7 : f32 to vector<8x128xf32>
    %8 = vector.extract_strided_slice %5 {offsets = [0, 0], sizes = [8, 128], strides = [1, 1]} : vector<64x128xf32> to vector<8x128xf32>
    %cst_8 = arith.constant dense<0.000000e+00> : vector<8x128xf32>
    %9 = tpu.matmul %7, %6, %cst_8 {dimension_numbers = #tpu.dot_dimension_numbers<[1], [0], [0], [1], [0, 0, 1, 1], [], []>} : vector<8x128xf32>, vector<128x128xf32>, vector<8x128xf32> -> vector<8x128xf32>
    %10 = arith.addf %8, %9 : vector<8x128xf32>
    %11 = math.tanh %10 : vector<8x128xf32>
    %c0_9 = arith.constant 0 : index
    %c0_10 = arith.constant 0 : index
    %12 = vector.load %arg7[%c0_9, %c0_10] : memref<8x1024xf32, #tpu.memory_space<vmem>>, vector<8x128xf32>
    tpu.vector_store %arg7[%c0_9, %c0_10], %11 {strides = array<i32>} : memref<8x1024xf32, #tpu.memory_space<vmem>>, vector<8x128xf32>,
    %13 = vector.extract_strided_slice %5 {offsets = [8, 0], sizes = [8, 128], strides = [1, 1]} : vector<64x128xf32> to vector<8x128xf32>
    %cst_11 = arith.constant dense<0.000000e+00> : vector<8x128xf32>
    %14 = tpu.matmul %11, %6, %cst_11 {dimension_numbers = #tpu.dot_dimension_numbers<[1], [0], [0], [1], [0, 0, 1, 1], [], []>} : vector<8x128xf32>, vector<128x128xf32>, vector<8x128xf32> -> vector<8x128xf32>
    %15 = arith.addf %13, %14 : vector<8x128xf32>
    %16 = math.tanh %15 : vector<8x128xf32>
    %c0_12 = arith.constant 0 : index
    %c128 = arith.constant 128 : index
    %17 = vector.load %arg7[%c0_12, %c128] : memref<8x1024xf32, #tpu.memory_space<vmem>>, vector<8x128xf32>
    tpu.vector_store %arg7[%c0_12, %c128], %16 {strides = array<i32>} : memref<8x1024xf32, #tpu.memory_space<vmem>>, vector<8x128xf32>,
    %18 = vector.extract_strided_slice %5 {offsets = [16, 0], sizes = [8, 128], strides = [1, 1]} : vector<64x128xf32> to vector<8x128xf32>
    %cst_13 = arith.constant dense<0.000000e+00> : vector<8x128xf32>
    %19 = tpu.matmul %16, %6, %cst_13 {dimension_numbers = #tpu.dot_dimension_numbers<[1], [0], [0], [1], [0, 0, 1, 1], [], []>} : vector<8x128xf32>, vector<128x128xf32>, vector<8x128xf32> -> vector<8x128xf32>
    %20 = arith.addf %18, %19 : vector<8x128xf32>
    %21 = math.tanh %20 : vector<8x128xf32>
    %c0_14 = arith.constant 0 : index
    %c256 = arith.constant 256 : index
    %22 = vector.load %arg7[%c0_14, %c256] : memref<8x1024xf32, #tpu.memory_space<vmem>>, vector<8x128xf32>
    tpu.vector_store %arg7[%c0_14, %c256], %21 {strides = array<i32>} : memref<8x1024xf32, #tpu.memory_space<vmem>>, vector<8x128xf32>,
    %23 = vector.extract_strided_slice %5 {offsets = [24, 0], sizes = [8, 128], strides = [1, 1]} : vector<64x128xf32> to vector<8x128xf32>
    %cst_15 = arith.constant dense<0.000000e+00> : vector<8x128xf32>
    %24 = tpu.matmul %21, %6, %cst_15 {dimension_numbers = #tpu.dot_dimension_numbers<[1], [0], [0], [1], [0, 0, 1, 1], [], []>} : vector<8x128xf32>, vector<128x128xf32>, vector<8x128xf32> -> vector<8x128xf32>
    %25 = arith.addf %23, %24 : vector<8x128xf32>
    %26 = math.tanh %25 : vector<8x128xf32>
    %c0_16 = arith.constant 0 : index
    %c384 = arith.constant 384 : index
    %27 = vector.load %arg7[%c0_16, %c384] : memref<8x1024xf32, #tpu.memory_space<vmem>>, vector<8x128xf32>
    tpu.vector_store %arg7[%c0_16, %c384], %26 {strides = array<i32>} : memref<8x1024xf32, #tpu.memory_space<vmem>>, vector<8x128xf32>,
    %28 = vector.extract_strided_slice %5 {offsets = [32, 0], sizes = [8, 128], strides = [1, 1]} : vector<64x128xf32> to vector<8x128xf32>
    %cst_17 = arith.constant dense<0.000000e+00> : vector<8x128xf32>
    %29 = tpu.matmul %26, %6, %cst_17 {dimension_numbers = #tpu.dot_dimension_numbers<[1], [0], [0], [1], [0, 0, 1, 1], [], []>} : vector<8x128xf32>, vector<128x128xf32>, vector<8x128xf32> -> vector<8x128xf32>
    %30 = arith.addf %28, %29 : vector<8x128xf32>
    %31 = math.tanh %30 : vector<8x128xf32>
    %c0_18 = arith.constant 0 : index
    %c512 = arith.constant 512 : index
    %32 = vector.load %arg7[%c0_18, %c512] : memref<8x1024xf32, #tpu.memory_space<vmem>>, vector<8x128xf32>
    tpu.vector_store %arg7[%c0_18, %c512], %31 {strides = array<i32>} : memref<8x1024xf32, #tpu.memory_space<vmem>>, vector<8x128xf32>,
    %33 = vector.extract_strided_slice %5 {offsets = [40, 0], sizes = [8, 128], strides = [1, 1]} : vector<64x128xf32> to vector<8x128xf32>
    %cst_19 = arith.constant dense<0.000000e+00> : vector<8x128xf32>
    %34 = tpu.matmul %31, %6, %cst_19 {dimension_numbers = #tpu.dot_dimension_numbers<[1], [0], [0], [1], [0, 0, 1, 1], [], []>} : vector<8x128xf32>, vector<128x128xf32>, vector<8x128xf32> -> vector<8x128xf32>
    %35 = arith.addf %33, %34 : vector<8x128xf32>
    %36 = math.tanh %35 : vector<8x128xf32>
    %c0_20 = arith.constant 0 : index
    %c640 = arith.constant 640 : index
    %37 = vector.load %arg7[%c0_20, %c640] : memref<8x1024xf32, #tpu.memory_space<vmem>>, vector<8x128xf32>
    tpu.vector_store %arg7[%c0_20, %c640], %36 {strides = array<i32>} : memref<8x1024xf32, #tpu.memory_space<vmem>>, vector<8x128xf32>,
    %38 = vector.extract_strided_slice %5 {offsets = [48, 0], sizes = [8, 128], strides = [1, 1]} : vector<64x128xf32> to vector<8x128xf32>
    %cst_21 = arith.constant dense<0.000000e+00> : vector<8x128xf32>
    %39 = tpu.matmul %36, %6, %cst_21 {dimension_numbers = #tpu.dot_dimension_numbers<[1], [0], [0], [1], [0, 0, 1, 1], [], []>} : vector<8x128xf32>, vector<128x128xf32>, vector<8x128xf32> -> vector<8x128xf32>
    %40 = arith.addf %38, %39 : vector<8x128xf32>
    %41 = math.tanh %40 : vector<8x128xf32>
    %c0_22 = arith.constant 0 : index
    %c768 = arith.constant 768 : index
    %42 = vector.load %arg7[%c0_22, %c768] : memref<8x1024xf32, #tpu.memory_space<vmem>>, vector<8x128xf32>
    tpu.vector_store %arg7[%c0_22, %c768], %41 {strides = array<i32>} : memref<8x1024xf32, #tpu.memory_space<vmem>>, vector<8x128xf32>,
    %43 = vector.extract_strided_slice %5 {offsets = [56, 0], sizes = [8, 128], strides = [1, 1]} : vector<64x128xf32> to vector<8x128xf32>
    %cst_23 = arith.constant dense<0.000000e+00> : vector<8x128xf32>
    %44 = tpu.matmul %41, %6, %cst_23 {dimension_numbers = #tpu.dot_dimension_numbers<[1], [0], [0], [1], [0, 0, 1, 1], [], []>} : vector<8x128xf32>, vector<128x128xf32>, vector<8x128xf32> -> vector<8x128xf32>
    %45 = arith.addf %43, %44 : vector<8x128xf32>
    %46 = math.tanh %45 : vector<8x128xf32>
    %c0_24 = arith.constant 0 : index
    %c896 = arith.constant 896 : index
    %47 = vector.load %arg7[%c0_24, %c896] : memref<8x1024xf32, #tpu.memory_space<vmem>>, vector<8x128xf32>
    tpu.vector_store %arg7[%c0_24, %c896], %46 {strides = array<i32>} : memref<8x1024xf32, #tpu.memory_space<vmem>>, vector<8x128xf32>,
    %c0_25 = arith.constant 0 : index
    %c0_26 = arith.constant 0 : index
    %48 = vector.load %arg7[%c0_25, %c0_26] : memref<8x1024xf32, #tpu.memory_space<vmem>>, vector<8x1024xf32>
    %c0_27 = arith.constant 0 : index
    %c0_28 = arith.constant 0 : index
    %49 = vector.load %arg4[%c0_27, %c0_28] : memref<1024x128xf32, #tpu.memory_space<vmem>>, vector<1024x128xf32>
    %cst_29 = arith.constant dense<0.000000e+00> : vector<8x128xf32>
    %50 = tpu.matmul %48, %49, %cst_29 {dimension_numbers = #tpu.dot_dimension_numbers<[1], [0], [0], [1], [0, 0, 1, 1], [], []>} : vector<8x1024xf32>, vector<1024x128xf32>, vector<8x128xf32> -> vector<8x128xf32>
    %c0_30 = arith.constant 0 : index
    %c0_31 = arith.constant 0 : index
    %51 = vector.load %arg5[%c0_30, %c0_31] : memref<1x128xf32, #tpu.memory_space<vmem>>, vector<1x128xf32>
    %52 = vector.broadcast %51 : vector<1x128xf32> to vector<8x128xf32>
    %53 = arith.addf %50, %52 : vector<8x128xf32>
    %c0_32 = arith.constant 0 : index
    %c0_33 = arith.constant 0 : index
    %54 = vector.load %arg6[%c0_32, %c0_33] : memref<8x128xf32, #tpu.memory_space<vmem>>, vector<8x128xf32>
    tpu.vector_store %arg6[%c0_32, %c0_33], %53 {strides = array<i32>} : memref<8x128xf32, #tpu.memory_space<vmem>>, vector<8x128xf32>,
    return
  }
}

</mosaic_0001>

<llo_original>
// kernel: tpu_custom_call.1
$region0: #{tpu_custom_call.1}
  #allocation0 [shape = 'u32[]', space=smem, size = 0x4, offset = 0x4, fixed_abs, tag = 'smem constant byte address 0x4 - core index']
  #allocation1 [shape = 'u32[144,128]{1,0:T(1,128)}', space=vmem, size = 0x12000, scoped, tag = 'internal scratch']
  #allocation2 [shape = 'f32[8,1024]{1,0:T(8,128)}', space=vmem, size = 0x8000, scoped, tag = 'scratch operand']
  %s0 = inlined_call_operand.vmem [shape: f32[64,16], index: 0, kind: input, shape index: {}]
  %s1 = inlined_call_operand.vmem [shape: f32[16,128], index: 1, kind: input, shape index: {}]
  %s2 = inlined_call_operand.hbm [shape: f32[128,128], index: 2, kind: input, shape index: {}]
  %s3 = inlined_call_operand.vmem [shape: f32[1,128], index: 3, kind: input, shape index: {}]
  %s4 = inlined_call_operand.hbm [shape: f32[1024,128], index: 4, kind: input, shape index: {}]
  %s5 = inlined_call_operand.vmem [shape: f32[1,128], index: 5, kind: input, shape index: {}]
  %s6 = inlined_call_operand.hbm [shape: f32[8,128], index: 6, kind: output, shape index: {}]
  %s7 = sld [smem:[#allocation0]]
  $region42: #{tpu_custom_call.1} parent=0
    _
  %s9 = ssub.s32 1, %s7
  %s10 = scalar_select 0, %s9, %s7
  $region1: #{tpu_custom_call.1} parent=0
    #allocation3 [shape = 'u8[65536]{0}', space=vmem, size = 0x10000, scoped, tag = 'input window, operand 2, single buffered']
    #allocation4 [shape = 's32[1]{0}', space=sflag, size = 0x4, scoped, tag = 'scoped memory for tpu_custom_call.1']
    #allocation5 [shape = 's32[1]{0}', space=sflag, size = 0x4, scoped, tag = 'scoped memory for tpu_custom_call.1']
    #allocation6 [shape = 'u8[524288]{0}', space=vmem, size = 0x80000, scoped, tag = 'input window, operand 4, single buffered']
    #allocation7 [shape = 's32[1]{0}', space=sflag, size = 0x4, scoped, tag = 'scoped memory for tpu_custom_call.1']
    #allocation8 [shape = 'u8[4096]{0}', space=vmem, size = 0x1000, scoped, tag = 'output window, operand 0, single buffered']
    %11 = vsyncpa [#allocation4], 0
    %12 = vsyncpa [#allocation7], 0
    %13 = vsyncpa [#allocation5], 0
    // Predicated region
    $region2: #{tpu_custom_call.1} parent=1 // pred_check
      _
    $region3: #{tpu_custom_call.1} parent=1 // pred_check_branch
      %15 = sbr.rel (0) target = $region5
    $region4: #{tpu_custom_call.1} parent=1 // pred_region
      _
    $region5: #{tpu_custom_call.1} parent=1 // pred_fallthru
      _
    // Predicated region
    $region6: #{tpu_custom_call.1} parent=1 // pred_check
      _
    $region7: #{tpu_custom_call.1} parent=1 // pred_check_branch
      %17 = sbr.rel (0) target = $region9
    $region8: #{tpu_custom_call.1} parent=1 // pred_region
      _
    $region9: #{tpu_custom_call.1} parent=1 // pred_fallthru
      _
    // Predicated region
    $region10: #{tpu_custom_call.1} parent=1 // pred_check
      _
    $region11: #{tpu_custom_call.1} parent=1 // pred_check_branch
      %19 = sbr.rel (0) target = $region13
    $region12: #{tpu_custom_call.1} parent=1 // pred_region
      %s21 = ssub.s32 2048, 2048
      %22 = vsyncadd [#allocation4], %s21
      %s23 = sshll.u32 [#allocation3], 4
      %s24 = int_to_ptr.vmem [resolvable:$true] %s23
      %29 = dma.hbm_to_vmem [thread:$0]  %s2, 2048, %s24, [#allocation4], 128, 128, 8
    $region13: #{tpu_custom_call.1} parent=1 // pred_fallthru
      _
    // Predicated region
    $region14: #{tpu_custom_call.1} parent=1 // pred_check
      _
    $region15: #{tpu_custom_call.1} parent=1 // pred_check_branch
      %31 = sbr.rel (0) target = $region17
    $region16: #{tpu_custom_call.1} parent=1 // pred_region
      _
    $region17: #{tpu_custom_call.1} parent=1 // pred_fallthru
      _
    // Predicated region
    $region18: #{tpu_custom_call.1} parent=1 // pred_check
      _
    $region19: #{tpu_custom_call.1} parent=1 // pred_check_branch
      %33 = sbr.rel (0) target = $region21
    $region20: #{tpu_custom_call.1} parent=1 // pred_region
      %s35 = ssub.s32 16384, 16384
      %36 = vsyncadd [#allocation7], %s35
      %s37 = sshll.u32 [#allocation6], 4
      %s38 = int_to_ptr.vmem [resolvable:$true] %s37
      %43 = dma.hbm_to_vmem [thread:$0]  %s4, 16384, %s38, [#allocation7], 128, 128, 8
    $region21: #{tpu_custom_call.1} parent=1 // pred_fallthru
      _
    // Predicated region
    $region22: #{tpu_custom_call.1} parent=1 // pred_check
      _
    $region23: #{tpu_custom_call.1} parent=1 // pred_check_branch
      %45 = sbr.rel (0) target = $region25
    $region24: #{tpu_custom_call.1} parent=1 // pred_region
      _
    $region25: #{tpu_custom_call.1} parent=1 // pred_fallthru
      _
    // Predicated region
    $region26: #{tpu_custom_call.1} parent=1 // pred_check
      _
    $region27: #{tpu_custom_call.1} parent=1 // pred_check_branch
      %47 = sbr.rel (0) target = $region29
    $region28: #{tpu_custom_call.1} parent=1 // pred_region
      %48 = dma.done [#allocation4], 2048
    $region29: #{tpu_custom_call.1} parent=1 // pred_fallthru
      _
    // Predicated region
    $region30: #{tpu_custom_call.1} parent=1 // pred_check
      _
    $region31: #{tpu_custom_call.1} parent=1 // pred_check_branch
      %50 = sbr.rel (0) target = $region33
    $region32: #{tpu_custom_call.1} parent=1 // pred_region
      %51 = dma.done [#allocation7], 16384
    $region33: #{tpu_custom_call.1} parent=1 // pred_fallthru
      _
    %v52 = vld [vmem:[%s0] sm:$0xff]
    %v53 = vld [vmem:[%s0 + $0x8] sm:$0xff]
    %v54 = vld [vmem:[%s0 + $0x10] sm:$0xff]
    %v55 = vld [vmem:[%s0 + $0x18] sm:$0xff]
    %v56 = vld [vmem:[%s0 + $0x20] sm:$0xff]
    %v57 = vld [vmem:[%s0 + $0x28] sm:$0xff]
    %v58 = vld [vmem:[%s0 + $0x30] sm:$0xff]
    %v59 = vld [vmem:[%s0 + $0x38] sm:$0xff]
    %v60 = vld [vmem:[%s1] sm:$0xff]
    %v61 = vld [vmem:[%s1 + $0x8] sm:$0xff]
    %v62 = vld [vmem:[%s3] sm:$0x1]
    %v64 = vlaneseq
    %v65 = vshrl.u32 %v64, 7
    %v66 = vsub.s32 0, %v65
    %v67 = vrot.slane %v62, %v66
    %vm69 = vcmask 130048
    %v71 = vsel %vm69, %v52, 0
    %v74 = vsel %vm69, %v53, 0
    %v77 = vsel %vm69, %v54, 0
    %v80 = vsel %vm69, %v55, 0
    %v83 = vsel %vm69, %v56, 0
    %v86 = vsel %vm69, %v57, 0
    %v89 = vsel %vm69, %v58, 0
    %v92 = vsel %vm69, %v59, 0
    %94 = vmatprep.subr.mxu0 0.0
    %95 = vmatpush1.msra.mxu0 %v60
    %96 = vmatprep.subr.mxu0 0.0
    %97 = vmatpush1.msra.mxu0 %v61
    %98 = vmatprep.subr.mxu0 0.0
    %99 = vmatpush1.msra.mxu0 0.0
    %100 = vmatprep.subr.mxu0 0.0
    %101 = vmatpush1.msra.mxu0 0.0
    %102 = vmatprep.subr.mxu0 0.0
    %103 = vmatpush1.msra.mxu0 0.0
    %104 = vmatprep.subr.mxu0 0.0
    %105 = vmatpush1.msra.mxu0 0.0
    %106 = vmatprep.subr.mxu0 0.0
    %107 = vmatpush1.msra.mxu0 0.0
    %108 = vmatprep.subr.mxu0 0.0
    %109 = vmatpush1.msra.mxu0 0.0
    %110 = vmatprep.subr.mxu0 0.0
    %111 = vmatpush1.msra.mxu0 0.0
    %112 = vmatprep.subr.mxu0 0.0
    %113 = vmatpush1.msra.mxu0 0.0
    %114 = vmatprep.subr.mxu0 0.0
    %115 = vmatpush1.msra.mxu0 0.0
    %116 = vmatprep.subr.mxu0 0.0
    %117 = vmatpush1.msra.mxu0 0.0
    %118 = vmatprep.subr.mxu0 0.0
    %119 = vmatpush1.msra.mxu0 0.0
    %120 = vmatprep.subr.mxu0 0.0
    %121 = vmatpush1.msra.mxu0 0.0
    %122 = vmatprep.subr.mxu0 0.0
    %123 = vmatpush1.msra.mxu0 0.0
    %124 = vmatprep.subr.mxu0 0.0
    %125 = vmatpush1.msra.mxu0 0.0
    %126 = vmatprep.subr.mxu0 0.0
    %127 = vmatpush1.msra.mxu0 0.0
    %128 = vmatprep.subr.mxu0 0.0
    %129 = vmatpush1.msra.mxu0 0.0
    %130 = vmatprep.subr.mxu0 0.0
    %131 = vmatpush1.msra.mxu0 0.0
    %132 = vmatprep.subr.mxu0 0.0
    %133 = vmatpush1.msra.mxu0 0.0
    %134 = vmatprep.subr.mxu0 0.0
    %135 = vmatpush1.msra.mxu0 0.0
    %136 = vmatprep.subr.mxu0 0.0
    %137 = vmatpush1.msra.mxu0 0.0
    %138 = vmatprep.subr.mxu0 0.0
    %139 = vmatpush1.msra.mxu0 0.0
    %140 = vmatprep.subr.mxu0 0.0
    %141 = vmatpush1.msra.mxu0 0.0
    %142 = vmatprep.subr.mxu0 0.0
    %143 = vmatpush1.msra.mxu0 0.0
    %144 = vmatprep.subr.mxu0 0.0
    %145 = vmatpush1.msra.mxu0 0.0
    %146 = vmatprep.subr.mxu0 0.0
    %147 = vmatpush1.msra.mxu0 0.0
    %148 = vmatprep.subr.mxu0 0.0
    %149 = vmatpush1.msra.mxu0 0.0
    %150 = vmatprep.subr.mxu0 0.0
    %151 = vmatpush1.msra.mxu0 0.0
    %152 = vmatprep.subr.mxu0 0.0
    %153 = vmatpush1.msra.mxu0 0.0
    %154 = vmatprep.subr.mxu0 0.0
    %155 = vmatpush1.msra.mxu0 0.0
    %156 = vmatprep.subr.mxu0 0.0
    %157 = vmatpush1.msra.mxu0 0.0
    %158 = vmatprep.mubr.f32.mxu0 0.0
    %159 = vmatmul.mubr.f32.gmra.mrb[0].mxu0 %v71
    %v160 = vpop.f32.mrb[0].mxu0
    %v161 = vadd.f32 %v67, %v160
    %v162 = vpop.f32.mrb[0].mxu0
    %163 = vmatprep.mubr.f32.mxu0 0.0
    %164 = vmatmul.mubr.f32.gmra.mrb[0].mxu0 %v74
    %v165 = vpop.f32.mrb[0].mxu0
    %v166 = vadd.f32 %v67, %v165
    %v167 = vpop.f32.mrb[0].mxu0
    %168 = vmatprep.mubr.f32.mxu0 0.0
    %169 = vmatmul.mubr.f32.gmra.mrb[0].mxu0 %v77
    %v170 = vpop.f32.mrb[0].mxu0
    %v171 = vadd.f32 %v67, %v170
    %v172 = vpop.f32.mrb[0].mxu0
    %173 = vmatprep.mubr.f32.mxu0 0.0
    %174 = vmatmul.mubr.f32.gmra.mrb[0].mxu0 %v80
    %v175 = vpop.f32.mrb[0].mxu0
    %v176 = vadd.f32 %v67, %v175
    %v177 = vpop.f32.mrb[0].mxu0
    %178 = vmatprep.mubr.f32.mxu0 0.0
    %179 = vmatmul.mubr.f32.gmra.mrb[0].mxu0 %v83
    %v180 = vpop.f32.mrb[0].mxu0
    %v181 = vadd.f32 %v67, %v180
    %v182 = vpop.f32.mrb[0].mxu0
    %183 = vmatprep.mubr.f32.mxu0 0.0
    %184 = vmatmul.mubr.f32.gmra.mrb[0].mxu0 %v86
    %v185 = vpop.f32.mrb[0].mxu0
    %v186 = vadd.f32 %v67, %v185
    %v187 = vpop.f32.mrb[0].mxu0
    %188 = vmatprep.mubr.f32.mxu0 0.0
    %189 = vmatmul.mubr.f32.gmra.mrb[0].mxu0 %v89
    %v190 = vpop.f32.mrb[0].mxu0
    %v191 = vadd.f32 %v67, %v190
    %v192 = vpop.f32.mrb[0].mxu0
    %193 = vmatprep.mubr.f32.mxu0 0.0
    %194 = vmatmul.mubr.f32.gmra.mrb[0].mxu0 %v92
    %v195 = vpop.f32.mrb[0].mxu0
    %v196 = vadd.f32 %v67, %v195
    %v197 = vpop.f32.mrb[0].mxu0
    %198 = vdwg.mxu0
    %v199 = vld [vmem:[#allocation3] sm:$0xff]
    %v200 = vld [vmem:[#allocation3 + $0x8] sm:$0xff]
    %v201 = vld [vmem:[#allocation3 + $0x10] sm:$0xff]
    %v202 = vld [vmem:[#allocation3 + $0x18] sm:$0xff]
    %v203 = vld [vmem:[#allocation3 + $0x20] sm:$0xff]
    %v204 = vld [vmem:[#allocation3 + $0x28] sm:$0xff]
    %v205 = vld [vmem:[#allocation3 + $0x30] sm:$0xff]
    %v206 = vld [vmem:[#allocation3 + $0x38] sm:$0xff]
    %v207 = vld [vmem:[#allocation3 + $0x40] sm:$0xff]
    %v208 = vld [vmem:[#allocation3 + $0x48] sm:$0xff]
    %v209 = vld [vmem:[#allocation3 + $0x50] sm:$0xff]
    %v210 = vld [vmem:[#allocation3 + $0x58] sm:$0xff]
    %v211 = vld [vmem:[#allocation3 + $0x60] sm:$0xff]
    %v212 = vld [vmem:[#allocation3 + $0x68] sm:$0xff]
    %v213 = vld [vmem:[#allocation3 + $0x70] sm:$0xff]
    %v214 = vld [vmem:[#allocation3 + $0x78] sm:$0xff]
    %215 = vmatprep.subr.mxu0 0.0
    %216 = vmatpush1.msra.mxu0 %v199
    %217 = vmatprep.subr.mxu0 0.0
    %218 = vmatpush1.msra.mxu0 %v200
    %219 = vmatprep.subr.mxu0 0.0
    %220 = vmatpush1.msra.mxu0 %v201
    %221 = vmatprep.subr.mxu0 0.0
    %222 = vmatpush1.msra.mxu0 %v202
    %223 = vmatprep.subr.mxu0 0.0
    %224 = vmatpush1.msra.mxu0 %v203
    %225 = vmatprep.subr.mxu0 0.0
    %226 = vmatpush1.msra.mxu0 %v204
    %227 = vmatprep.subr.mxu0 0.0
    %228 = vmatpush1.msra.mxu0 %v205
    %229 = vmatprep.subr.mxu0 0.0
    %230 = vmatpush1.msra.mxu0 %v206
    %231 = vmatprep.subr.mxu0 0.0
    %232 = vmatpush1.msra.mxu0 %v207
    %233 = vmatprep.subr.mxu0 0.0
    %234 = vmatpush1.msra.mxu0 %v208
    %235 = vmatprep.subr.mxu0 0.0
    %236 = vmatpush1.msra.mxu0 %v209
    %237 = vmatprep.subr.mxu0 0.0
    %238 = vmatpush1.msra.mxu0 %v210
    %239 = vmatprep.subr.mxu0 0.0
    %240 = vmatpush1.msra.mxu0 %v211
    %241 = vmatprep.subr.mxu0 0.0
    %242 = vmatpush1.msra.mxu0 %v212
    %243 = vmatprep.subr.mxu0 0.0
    %244 = vmatpush1.msra.mxu0 %v213
    %245 = vmatprep.subr.mxu0 0.0
    %246 = vmatpush1.msra.mxu0 %v214
    %247 = vmatprep.subr.mxu0 0.0
    %248 = vmatpush1.msra.mxu0 0.0
    %249 = vmatprep.subr.mxu0 0.0
    %250 = vmatpush1.msra.mxu0 0.0
    %251 = vmatprep.subr.mxu0 0.0
    %252 = vmatpush1.msra.mxu0 0.0
    %253 = vmatprep.subr.mxu0 0.0
    %254 = vmatpush1.msra.mxu0 0.0
    %255 = vmatprep.subr.mxu0 0.0
    %256 = vmatpush1.msra.mxu0 0.0
    %257 = vmatprep.subr.mxu0 0.0
    %258 = vmatpush1.msra.mxu0 0.0
    %259 = vmatprep.subr.mxu0 0.0
    %260 = vmatpush1.msra.mxu0 0.0
    %261 = vmatprep.subr.mxu0 0.0
    %262 = vmatpush1.msra.mxu0 0.0
    %263 = vmatprep.subr.mxu0 0.0
    %264 = vmatpush1.msra.mxu0 0.0
    %265 = vmatprep.subr.mxu0 0.0
    %266 = vmatpush1.msra.mxu0 0.0
    %267 = vmatprep.subr.mxu0 0.0
    %268 = vmatpush1.msra.mxu0 0.0
    %269 = vmatprep.subr.mxu0 0.0
    %270 = vmatpush1.msra.mxu0 0.0
    %271 = vmatprep.subr.mxu0 0.0
    %272 = vmatpush1.msra.mxu0 0.0
    %273 = vmatprep.subr.mxu0 0.0
    %274 = vmatpush1.msra.mxu0 0.0
    %275 = vmatprep.subr.mxu0 0.0
    %276 = vmatpush1.msra.mxu0 0.0
    %277 = vmatprep.subr.mxu0 0.0
    %278 = vmatpush1.msra.mxu0 0.0
    %279 = vmatprep.mubr.f32.mxu0 0.0
    %280 = vmatmul.mubr.f32.gmra.mrb[0].mxu0 0.0
    %v281 = vpop.f32.mrb[0].mxu0
    %v282 = vadd.f32 0.0, %v281
    %v283 = vpop.f32.mrb[0].mxu0
    %284 = vdwg.mxu0
    %v285 = vadd.f32 %v161, %v282
    %v286 = vtanh.pop %v285
    %287 = vst [vmem:[#allocation2] sm:$0xff] %v286
    %288 = vmatprep.subr.mxu0 0.0
    %289 = vmatpush1.msra.mxu0 %v199
    %290 = vmatprep.subr.mxu0 0.0
    %291 = vmatpush1.msra.mxu0 %v200
    %292 = vmatprep.subr.mxu0 0.0
    %293 = vmatpush1.msra.mxu0 %v201
    %294 = vmatprep.subr.mxu0 0.0
    %295 = vmatpush1.msra.mxu0 %v202
    %296 = vmatprep.subr.mxu0 0.0
    %297 = vmatpush1.msra.mxu0 %v203
    %298 = vmatprep.subr.mxu0 0.0
    %299 = vmatpush1.msra.mxu0 %v204
    %300 = vmatprep.subr.mxu0 0.0
    %301 = vmatpush1.msra.mxu0 %v205
    %302 = vmatprep.subr.mxu0 0.0
    %303 = vmatpush1.msra.mxu0 %v206
    %304 = vmatprep.subr.mxu0 0.0
    %305 = vmatpush1.msra.mxu0 %v207
    %306 = vmatprep.subr.mxu0 0.0
    %307 = vmatpush1.msra.mxu0 %v208
    %308 = vmatprep.subr.mxu0 0.0
    %309 = vmatpush1.msra.mxu0 %v209
    %310 = vmatprep.subr.mxu0 0.0
    %311 = vmatpush1.msra.mxu0 %v210
    %312 = vmatprep.subr.mxu0 0.0
    %313 = vmatpush1.msra.mxu0 %v211
    %314 = vmatprep.subr.mxu0 0.0
    %315 = vmatpush1.msra.mxu0 %v212
    %316 = vmatprep.subr.mxu0 0.0
    %317 = vmatpush1.msra.mxu0 %v213
    %318 = vmatprep.subr.mxu0 0.0
    %319 = vmatpush1.msra.mxu0 %v214
    %320 = vmatprep.subr.mxu0 0.0
    %321 = vmatpush1.msra.mxu0 0.0
    %322 = vmatprep.subr.mxu0 0.0
    %323 = vmatpush1.msra.mxu0 0.0
    %324 = vmatprep.subr.mxu0 0.0
    %325 = vmatpush1.msra.mxu0 0.0
    %326 = vmatprep.subr.mxu0 0.0
    %327 = vmatpush1.msra.mxu0 0.0
    %328 = vmatprep.subr.mxu0 0.0
    %329 = vmatpush1.msra.mxu0 0.0
    %330 = vmatprep.subr.mxu0 0.0
    %331 = vmatpush1.msra.mxu0 0.0
    %332 = vmatprep.subr.mxu0 0.0
    %333 = vmatpush1.msra.mxu0 0.0
    %334 = vmatprep.subr.mxu0 0.0
    %335 = vmatpush1.msra.mxu0 0.0
    %336 = vmatprep.subr.mxu0 0.0
    %337 = vmatpush1.msra.mxu0 0.0
    %338 = vmatprep.subr.mxu0 0.0
    %339 = vmatpush1.msra.mxu0 0.0
    %340 = vmatprep.subr.mxu0 0.0
    %341 = vmatpush1.msra.mxu0 0.0
    %342 = vmatprep.subr.mxu0 0.0
    %343 = vmatpush1.msra.mxu0 0.0
    %344 = vmatprep.subr.mxu0 0.0
    %345 = vmatpush1.msra.mxu0 0.0
    %346 = vmatprep.subr.mxu0 0.0
    %347 = vmatpush1.msra.mxu0 0.0
    %348 = vmatprep.subr.mxu0 0.0
    %349 = vmatpush1.msra.mxu0 0.0
    %350 = vmatprep.subr.mxu0 0.0
    %351 = vmatpush1.msra.mxu0 0.0
    %352 = vmatprep.mubr.f32.mxu0 0.0
    %353 = vmatmul.mubr.f32.gmra.mrb[0].mxu0 %v286
    %v354 = vpop.f32.mrb[0].mxu0
    %v355 = vadd.f32 0.0, %v354
    %v356 = vpop.f32.mrb[0].mxu0
    %357 = vdwg.mxu0
    %v358 = vadd.f32 %v166, %v355
    %v359 = vtanh.pop %v358
    %360 = vst [vmem:[#allocation2 + $0x8] sm:$0xff] %v359
    %361 = vmatprep.subr.mxu0 0.0
    %362 = vmatpush1.msra.mxu0 %v199
    %363 = vmatprep.subr.mxu0 0.0
    %364 = vmatpush1.msra.mxu0 %v200
    %365 = vmatprep.subr.mxu0 0.0
    %366 = vmatpush1.msra.mxu0 %v201
    %367 = vmatprep.subr.mxu0 0.0
    %368 = vmatpush1.msra.mxu0 %v202
    %369 = vmatprep.subr.mxu0 0.0
    %370 = vmatpush1.msra.mxu0 %v203
    %371 = vmatprep.subr.mxu0 0.0
    %372 = vmatpush1.msra.mxu0 %v204
    %373 = vmatprep.subr.mxu0 0.0
    %374 = vmatpush1.msra.mxu0 %v205
    %375 = vmatprep.subr.mxu0 0.0
    %376 = vmatpush1.msra.mxu0 %v206
    %377 = vmatprep.subr.mxu0 0.0
    %378 = vmatpush1.msra.mxu0 %v207
    %379 = vmatprep.subr.mxu0 0.0
    %380 = vmatpush1.msra.mxu0 %v208
    %381 = vmatprep.subr.mxu0 0.0
    %382 = vmatpush1.msra.mxu0 %v209
    %383 = vmatprep.subr.mxu0 0.0
    %384 = vmatpush1.msra.mxu0 %v210
    %385 = vmatprep.subr.mxu0 0.0
    %386 = vmatpush1.msra.mxu0 %v211
    %387 = vmatprep.subr.mxu0 0.0
    %388 = vmatpush1.msra.mxu0 %v212
    %389 = vmatprep.subr.mxu0 0.0
    %390 = vmatpush1.msra.mxu0 %v213
    %391 = vmatprep.subr.mxu0 0.0
    %392 = vmatpush1.msra.mxu0 %v214
    %393 = vmatprep.subr.mxu0 0.0
    %394 = vmatpush1.msra.mxu0 0.0
    %395 = vmatprep.subr.mxu0 0.0
    %396 = vmatpush1.msra.mxu0 0.0
    %397 = vmatprep.subr.mxu0 0.0
    %398 = vmatpush1.msra.mxu0 0.0
    %399 = vmatprep.subr.mxu0 0.0
    %400 = vmatpush1.msra.mxu0 0.0
    %401 = vmatprep.subr.mxu0 0.0
    %402 = vmatpush1.msra.mxu0 0.0
    %403 = vmatprep.subr.mxu0 0.0
    %404 = vmatpush1.msra.mxu0 0.0
    %405 = vmatprep.subr.mxu0 0.0
    %406 = vmatpush1.msra.mxu0 0.0
    %407 = vmatprep.subr.mxu0 0.0
    %408 = vmatpush1.msra.mxu0 0.0
    %409 = vmatprep.subr.mxu0 0.0
    %410 = vmatpush1.msra.mxu0 0.0
    %411 = vmatprep.subr.mxu0 0.0
    %412 = vmatpush1.msra.mxu0 0.0
    %413 = vmatprep.subr.mxu0 0.0
    %414 = vmatpush1.msra.mxu0 0.0
    %415 = vmatprep.subr.mxu0 0.0
    %416 = vmatpush1.msra.mxu0 0.0
    %417 = vmatprep.subr.mxu0 0.0
    %418 = vmatpush1.msra.mxu0 0.0
    %419 = vmatprep.subr.mxu0 0.0
    %420 = vmatpush1.msra.mxu0 0.0
    %421 = vmatprep.subr.mxu0 0.0
    %422 = vmatpush1.msra.mxu0 0.0
    %423 = vmatprep.subr.mxu0 0.0
    %424 = vmatpush1.msra.mxu0 0.0
    %425 = vmatprep.mubr.f32.mxu0 0.0
    %426 = vmatmul.mubr.f32.gmra.mrb[0].mxu0 %v359
    %v427 = vpop.f32.mrb[0].mxu0
    %v428 = vadd.f32 0.0, %v427
    %v429 = vpop.f32.mrb[0].mxu0
    %430 = vdwg.mxu0
    %v431 = vadd.f32 %v171, %v428
    %v432 = vtanh.pop %v431
    %433 = vst [vmem:[#allocation2 + $0x10] sm:$0xff] %v432
    %434 = vmatprep.subr.mxu0 0.0
    %435 = vmatpush1.msra.mxu0 %v199
    %436 = vmatprep.subr.mxu0 0.0
    %437 = vmatpush1.msra.mxu0 %v200
    %438 = vmatprep.subr.mxu0 0.0
    %439 = vmatpush1.msra.mxu0 %v201
    %440 = vmatprep.subr.mxu0 0.0
    %441 = vmatpush1.msra.mxu0 %v202
    %442 = vmatprep.subr.mxu0 0.0
    %443 = vmatpush1.msra.mxu0 %v203
    %444 = vmatprep.subr.mxu0 0.0
    %445 = vmatpush1.msra.mxu0 %v204
    %446 = vmatprep.subr.mxu0 0.0
    %447 = vmatpush1.msra.mxu0 %v205
    %448 = vmatprep.subr.mxu0 0.0
    %449 = vmatpush1.msra.mxu0 %v206
    %450 = vmatprep.subr.mxu0 0.0
    %451 = vmatpush1.msra.mxu0 %v207
    %452 = vmatprep.subr.mxu0 0.0
    %453 = vmatpush1.msra.mxu0 %v208
    %454 = vmatprep.subr.mxu0 0.0
    %455 = vmatpush1.msra.mxu0 %v209
    %456 = vmatprep.subr.mxu0 0.0
    %457 = vmatpush1.msra.mxu0 %v210
    %458 = vmatprep.subr.mxu0 0.0
    %459 = vmatpush1.msra.mxu0 %v211
    %460 = vmatprep.subr.mxu0 0.0
    %461 = vmatpush1.msra.mxu0 %v212
    %462 = vmatprep.subr.mxu0 0.0
    %463 = vmatpush1.msra.mxu0 %v213
    %464 = vmatprep.subr.mxu0 0.0
    %465 = vmatpush1.msra.mxu0 %v214
    %466 = vmatprep.subr.mxu0 0.0
    %467 = vmatpush1.msra.mxu0 0.0
    %468 = vmatprep.subr.mxu0 0.0
    %469 = vmatpush1.msra.mxu0 0.0
    %470 = vmatprep.subr.mxu0 0.0
    %471 = vmatpush1.msra.mxu0 0.0
    %472 = vmatprep.subr.mxu0 0.0
    %473 = vmatpush1.msra.mxu0 0.0
    %474 = vmatprep.subr.mxu0 0.0
    %475 = vmatpush1.msra.mxu0 0.0
    %476 = vmatprep.subr.mxu0 0.0
    %477 = vmatpush1.msra.mxu0 0.0
    %478 = vmatprep.subr.mxu0 0.0
    %479 = vmatpush1.msra.mxu0 0.0
    %480 = vmatprep.subr.mxu0 0.0
    %481 = vmatpush1.msra.mxu0 0.0
    %482 = vmatprep.subr.mxu0 0.0
    %483 = vmatpush1.msra.mxu0 0.0
    %484 = vmatprep.subr.mxu0 0.0
    %485 = vmatpush1.msra.mxu0 0.0
    %486 = vmatprep.subr.mxu0 0.0
    %487 = vmatpush1.msra.mxu0 0.0
    %488 = vmatprep.subr.mxu0 0.0
    %489 = vmatpush1.msra.mxu0 0.0
    %490 = vmatprep.subr.mxu0 0.0
    %491 = vmatpush1.msra.mxu0 0.0
    %492 = vmatprep.subr.mxu0 0.0
    %493 = vmatpush1.msra.mxu0 0.0
    %494 = vmatprep.subr.mxu0 0.0
    %495 = vmatpush1.msra.mxu0 0.0
    %496 = vmatprep.subr.mxu0 0.0
    %497 = vmatpush1.msra.mxu0 0.0
    %498 = vmatprep.mubr.f32.mxu0 0.0
    %499 = vmatmul.mubr.f32.gmra.mrb[0].mxu0 %v432
    %v500 = vpop.f32.mrb[0].mxu0
    %v501 = vadd.f32 0.0, %v500
    %v502 = vpop.f32.mrb[0].mxu0
    %503 = vdwg.mxu0
    %v504 = vadd.f32 %v176, %v501
    %v505 = vtanh.pop %v504
    %506 = vst [vmem:[#allocation2 + $0x18] sm:$0xff] %v505
    %507 = vmatprep.subr.mxu0 0.0
    %508 = vmatpush1.msra.mxu0 %v199
    %509 = vmatprep.subr.mxu0 0.0
    %510 = vmatpush1.msra.mxu0 %v200
    %511 = vmatprep.subr.mxu0 0.0
    %512 = vmatpush1.msra.mxu0 %v201
    %513 = vmatprep.subr.mxu0 0.0
    %514 = vmatpush1.msra.mxu0 %v202
    %515 = vmatprep.subr.mxu0 0.0
    %516 = vmatpush1.msra.mxu0 %v203
    %517 = vmatprep.subr.mxu0 0.0
    %518 = vmatpush1.msra.mxu0 %v204
    %519 = vmatprep.subr.mxu0 0.0
    %520 = vmatpush1.msra.mxu0 %v205
    %521 = vmatprep.subr.mxu0 0.0
    %522 = vmatpush1.msra.mxu0 %v206
    %523 = vmatprep.subr.mxu0 0.0
    %524 = vmatpush1.msra.mxu0 %v207
    %525 = vmatprep.subr.mxu0 0.0
    %526 = vmatpush1.msra.mxu0 %v208
    %527 = vmatprep.subr.mxu0 0.0
    %528 = vmatpush1.msra.mxu0 %v209
    %529 = vmatprep.subr.mxu0 0.0
    %530 = vmatpush1.msra.mxu0 %v210
    %531 = vmatprep.subr.mxu0 0.0
    %532 = vmatpush1.msra.mxu0 %v211
    %533 = vmatprep.subr.mxu0 0.0
    %534 = vmatpush1.msra.mxu0 %v212
    %535 = vmatprep.subr.mxu0 0.0
    %536 = vmatpush1.msra.mxu0 %v213
    %537 = vmatprep.subr.mxu0 0.0
    %538 = vmatpush1.msra.mxu0 %v214
    %539 = vmatprep.subr.mxu0 0.0
    %540 = vmatpush1.msra.mxu0 0.0
    %541 = vmatprep.subr.mxu0 0.0
    %542 = vmatpush1.msra.mxu0 0.0
    %543 = vmatprep.subr.mxu0 0.0
    %544 = vmatpush1.msra.mxu0 0.0
    %545 = vmatprep.subr.mxu0 0.0
    %546 = vmatpush1.msra.mxu0 0.0
    %547 = vmatprep.subr.mxu0 0.0
    %548 = vmatpush1.msra.mxu0 0.0
    %549 = vmatprep.subr.mxu0 0.0
    %550 = vmatpush1.msra.mxu0 0.0
    %551 = vmatprep.subr.mxu0 0.0
    %552 = vmatpush1.msra.mxu0 0.0
    %553 = vmatprep.subr.mxu0 0.0
    %554 = vmatpush1.msra.mxu0 0.0
    %555 = vmatprep.subr.mxu0 0.0
    %556 = vmatpush1.msra.mxu0 0.0
    %557 = vmatprep.subr.mxu0 0.0
    %558 = vmatpush1.msra.mxu0 0.0
    %559 = vmatprep.subr.mxu0 0.0
    %560 = vmatpush1.msra.mxu0 0.0
    %561 = vmatprep.subr.mxu0 0.0
    %562 = vmatpush1.msra.mxu0 0.0
    %563 = vmatprep.subr.mxu0 0.0
    %564 = vmatpush1.msra.mxu0 0.0
    %565 = vmatprep.subr.mxu0 0.0
    %566 = vmatpush1.msra.mxu0 0.0
    %567 = vmatprep.subr.mxu0 0.0
    %568 = vmatpush1.msra.mxu0 0.0
    %569 = vmatprep.subr.mxu0 0.0
    %570 = vmatpush1.msra.mxu0 0.0
    %571 = vmatprep.mubr.f32.mxu0 0.0
    %572 = vmatmul.mubr.f32.gmra.mrb[0].mxu0 %v505
    %v573 = vpop.f32.mrb[0].mxu0
    %v574 = vadd.f32 0.0, %v573
    %v575 = vpop.f32.mrb[0].mxu0
    %576 = vdwg.mxu0
    %v577 = vadd.f32 %v181, %v574
    %v578 = vtanh.pop %v577
    %579 = vst [vmem:[#allocation2 + $0x20] sm:$0xff] %v578
    %580 = vmatprep.subr.mxu0 0.0
    %581 = vmatpush1.msra.mxu0 %v199
    %582 = vmatprep.subr.mxu0 0.0
    %583 = vmatpush1.msra.mxu0 %v200
    %584 = vmatprep.subr.mxu0 0.0
    %585 = vmatpush1.msra.mxu0 %v201
    %586 = vmatprep.subr.mxu0 0.0
    %587 = vmatpush1.msra.mxu0 %v202
    %588 = vmatprep.subr.mxu0 0.0
    %589 = vmatpush1.msra.mxu0 %v203
    %590 = vmatprep.subr.mxu0 0.0
    %591 = vmatpush1.msra.mxu0 %v204
    %592 = vmatprep.subr.mxu0 0.0
    %593 = vmatpush1.msra.mxu0 %v205
    %594 = vmatprep.subr.mxu0 0.0
    %595 = vmatpush1.msra.mxu0 %v206
    %596 = vmatprep.subr.mxu0 0.0
    %597 = vmatpush1.msra.mxu0 %v207
    %598 = vmatprep.subr.mxu0 0.0
    %599 = vmatpush1.msra.mxu0 %v208
    %600 = vmatprep.subr.mxu0 0.0
    %601 = vmatpush1.msra.mxu0 %v209
    %602 = vmatprep.subr.mxu0 0.0
    %603 = vmatpush1.msra.mxu0 %v210
    %604 = vmatprep.subr.mxu0 0.0
    %605 = vmatpush1.msra.mxu0 %v211
    %606 = vmatprep.subr.mxu0 0.0
    %607 = vmatpush1.msra.mxu0 %v212
    %608 = vmatprep.subr.mxu0 0.0
    %609 = vmatpush1.msra.mxu0 %v213
    %610 = vmatprep.subr.mxu0 0.0
    %611 = vmatpush1.msra.mxu0 %v214
    %612 = vmatprep.subr.mxu0 0.0
    %613 = vmatpush1.msra.mxu0 0.0
    %614 = vmatprep.subr.mxu0 0.0
    %615 = vmatpush1.msra.mxu0 0.0
    %616 = vmatprep.subr.mxu0 0.0
    %617 = vmatpush1.msra.mxu0 0.0
    %618 = vmatprep.subr.mxu0 0.0
    %619 = vmatpush1.msra.mxu0 0.0
    %620 = vmatprep.subr.mxu0 0.0
    %621 = vmatpush1.msra.mxu0 0.0
    %622 = vmatprep.subr.mxu0 0.0
    %623 = vmatpush1.msra.mxu0 0.0
    %624 = vmatprep.subr.mxu0 0.0
    %625 = vmatpush1.msra.mxu0 0.0
    %626 = vmatprep.subr.mxu0 0.0
    %627 = vmatpush1.msra.mxu0 0.0
    %628 = vmatprep.subr.mxu0 0.0
    %629 = vmatpush1.msra.mxu0 0.0
    %630 = vmatprep.subr.mxu0 0.0
    %631 = vmatpush1.msra.mxu0 0.0
    %632 = vmatprep.subr.mxu0 0.0
    %633 = vmatpush1.msra.mxu0 0.0
    %634 = vmatprep.subr.mxu0 0.0
    %635 = vmatpush1.msra.mxu0 0.0
    %636 = vmatprep.subr.mxu0 0.0
    %637 = vmatpush1.msra.mxu0 0.0
    %638 = vmatprep.subr.mxu0 0.0
    %639 = vmatpush1.msra.mxu0 0.0
    %640 = vmatprep.subr.mxu0 0.0
    %641 = vmatpush1.msra.mxu0 0.0
    %642 = vmatprep.subr.mxu0 0.0
    %643 = vmatpush1.msra.mxu0 0.0
    %644 = vmatprep.mubr.f32.mxu0 0.0
    %645 = vmatmul.mubr.f32.gmra.mrb[0].mxu0 %v578
    %v646 = vpop.f32.mrb[0].mxu0
    %v647 = vadd.f32 0.0, %v646
    %v648 = vpop.f32.mrb[0].mxu0
    %649 = vdwg.mxu0
    %v650 = vadd.f32 %v186, %v647
    %v651 = vtanh.pop %v650
    %652 = vst [vmem:[#allocation2 + $0x28] sm:$0xff] %v651
    %653 = vmatprep.subr.mxu0 0.0
    %654 = vmatpush1.msra.mxu0 %v199
    %655 = vmatprep.subr.mxu0 0.0
    %656 = vmatpush1.msra.mxu0 %v200
    %657 = vmatprep.subr.mxu0 0.0
    %658 = vmatpush1.msra.mxu0 %v201
    %659 = vmatprep.subr.mxu0 0.0
    %660 = vmatpush1.msra.mxu0 %v202
    %661 = vmatprep.subr.mxu0 0.0
    %662 = vmatpush1.msra.mxu0 %v203
    %663 = vmatprep.subr.mxu0 0.0
    %664 = vmatpush1.msra.mxu0 %v204
    %665 = vmatprep.subr.mxu0 0.0
    %666 = vmatpush1.msra.mxu0 %v205
    %667 = vmatprep.subr.mxu0 0.0
    %668 = vmatpush1.msra.mxu0 %v206
    %669 = vmatprep.subr.mxu0 0.0
    %670 = vmatpush1.msra.mxu0 %v207
    %671 = vmatprep.subr.mxu0 0.0
    %672 = vmatpush1.msra.mxu0 %v208
    %673 = vmatprep.subr.mxu0 0.0
    %674 = vmatpush1.msra.mxu0 %v209
    %675 = vmatprep.subr.mxu0 0.0
    %676 = vmatpush1.msra.mxu0 %v210
    %677 = vmatprep.subr.mxu0 0.0
    %678 = vmatpush1.msra.mxu0 %v211
    %679 = vmatprep.subr.mxu0 0.0
    %680 = vmatpush1.msra.mxu0 %v212
    %681 = vmatprep.subr.mxu0 0.0
    %682 = vmatpush1.msra.mxu0 %v213
    %683 = vmatprep.subr.mxu0 0.0
    %684 = vmatpush1.msra.mxu0 %v214
    %685 = vmatprep.subr.mxu0 0.0
    %686 = vmatpush1.msra.mxu0 0.0
    %687 = vmatprep.subr.mxu0 0.0
    %688 = vmatpush1.msra.mxu0 0.0
    %689 = vmatprep.subr.mxu0 0.0
    %690 = vmatpush1.msra.mxu0 0.0
    %691 = vmatprep.subr.mxu0 0.0
    %692 = vmatpush1.msra.mxu0 0.0
    %693 = vmatprep.subr.mxu0 0.0
    %694 = vmatpush1.msra.mxu0 0.0
    %695 = vmatprep.subr.mxu0 0.0
    %696 = vmatpush1.msra.mxu0 0.0
    %697 = vmatprep.subr.mxu0 0.0
    %698 = vmatpush1.msra.mxu0 0.0
    %699 = vmatprep.subr.mxu0 0.0
    %700 = vmatpush1.msra.mxu0 0.0
    %701 = vmatprep.subr.mxu0 0.0
    %702 = vmatpush1.msra.mxu0 0.0
    %703 = vmatprep.subr.mxu0 0.0
    %704 = vmatpush1.msra.mxu0 0.0
    %705 = vmatprep.subr.mxu0 0.0
    %706 = vmatpush1.msra.mxu0 0.0
    %707 = vmatprep.subr.mxu0 0.0
    %708 = vmatpush1.msra.mxu0 0.0
    %709 = vmatprep.subr.mxu0 0.0
    %710 = vmatpush1.msra.mxu0 0.0
    %711 = vmatprep.subr.mxu0 0.0
    %712 = vmatpush1.msra.mxu0 0.0
    %713 = vmatprep.subr.mxu0 0.0
    %714 = vmatpush1.msra.mxu0 0.0
    %715 = vmatprep.subr.mxu0 0.0
    %716 = vmatpush1.msra.mxu0 0.0
    %717 = vmatprep.mubr.f32.mxu0 0.0
    %718 = vmatmul.mubr.f32.gmra.mrb[0].mxu0 %v651
    %v719 = vpop.f32.mrb[0].mxu0
    %v720 = vadd.f32 0.0, %v719
    %v721 = vpop.f32.mrb[0].mxu0
    %722 = vdwg.mxu0
    %v723 = vadd.f32 %v191, %v720
    %v724 = vtanh.pop %v723
    %725 = vst [vmem:[#allocation2 + $0x30] sm:$0xff] %v724
    %726 = vmatprep.subr.mxu0 0.0
    %727 = vmatpush1.msra.mxu0 %v199
    %728 = vmatprep.subr.mxu0 0.0
    %729 = vmatpush1.msra.mxu0 %v200
    %730 = vmatprep.subr.mxu0 0.0
    %731 = vmatpush1.msra.mxu0 %v201
    %732 = vmatprep.subr.mxu0 0.0
    %733 = vmatpush1.msra.mxu0 %v202
    %734 = vmatprep.subr.mxu0 0.0
    %735 = vmatpush1.msra.mxu0 %v203
    %736 = vmatprep.subr.mxu0 0.0
    %737 = vmatpush1.msra.mxu0 %v204
    %738 = vmatprep.subr.mxu0 0.0
    %739 = vmatpush1.msra.mxu0 %v205
    %740 = vmatprep.subr.mxu0 0.0
    %741 = vmatpush1.msra.mxu0 %v206
    %742 = vmatprep.subr.mxu0 0.0
    %743 = vmatpush1.msra.mxu0 %v207
    %744 = vmatprep.subr.mxu0 0.0
    %745 = vmatpush1.msra.mxu0 %v208
    %746 = vmatprep.subr.mxu0 0.0
    %747 = vmatpush1.msra.mxu0 %v209
    %748 = vmatprep.subr.mxu0 0.0
    %749 = vmatpush1.msra.mxu0 %v210
    %750 = vmatprep.subr.mxu0 0.0
    %751 = vmatpush1.msra.mxu0 %v211
    %752 = vmatprep.subr.mxu0 0.0
    %753 = vmatpush1.msra.mxu0 %v212
    %754 = vmatprep.subr.mxu0 0.0
    %755 = vmatpush1.msra.mxu0 %v213
    %756 = vmatprep.subr.mxu0 0.0
    %757 = vmatpush1.msra.mxu0 %v214
    %758 = vmatprep.subr.mxu0 0.0
    %759 = vmatpush1.msra.mxu0 0.0
    %760 = vmatprep.subr.mxu0 0.0
    %761 = vmatpush1.msra.mxu0 0.0
    %762 = vmatprep.subr.mxu0 0.0
    %763 = vmatpush1.msra.mxu0 0.0
    %764 = vmatprep.subr.mxu0 0.0
    %765 = vmatpush1.msra.mxu0 0.0
    %766 = vmatprep.subr.mxu0 0.0
    %767 = vmatpush1.msra.mxu0 0.0
    %768 = vmatprep.subr.mxu0 0.0
    %769 = vmatpush1.msra.mxu0 0.0
    %770 = vmatprep.subr.mxu0 0.0
    %771 = vmatpush1.msra.mxu0 0.0
    %772 = vmatprep.subr.mxu0 0.0
    %773 = vmatpush1.msra.mxu0 0.0
    %774 = vmatprep.subr.mxu0 0.0
    %775 = vmatpush1.msra.mxu0 0.0
    %776 = vmatprep.subr.mxu0 0.0
    %777 = vmatpush1.msra.mxu0 0.0
    %778 = vmatprep.subr.mxu0 0.0
    %779 = vmatpush1.msra.mxu0 0.0
    %780 = vmatprep.subr.mxu0 0.0
    %781 = vmatpush1.msra.mxu0 0.0
    %782 = vmatprep.subr.mxu0 0.0
    %783 = vmatpush1.msra.mxu0 0.0
    %784 = vmatprep.subr.mxu0 0.0
    %785 = vmatpush1.msra.mxu0 0.0
    %786 = vmatprep.subr.mxu0 0.0
    %787 = vmatpush1.msra.mxu0 0.0
    %788 = vmatprep.subr.mxu0 0.0
    %789 = vmatpush1.msra.mxu0 0.0
    %790 = vmatprep.mubr.f32.mxu0 0.0
    %791 = vmatmul.mubr.f32.gmra.mrb[0].mxu0 %v724
    %v792 = vpop.f32.mrb[0].mxu0
    %v793 = vadd.f32 0.0, %v792
    %v794 = vpop.f32.mrb[0].mxu0
    %795 = vdwg.mxu0
    %v796 = vadd.f32 %v196, %v793
    %v797 = vtanh.pop %v796
    %798 = vst [vmem:[#allocation2 + $0x38] sm:$0xff] %v797
    %v799 = vld [vmem:[#allocation2] sm:$0xff]
    %v800 = vld [vmem:[#allocation2 + $0x8] sm:$0xff]
    %v801 = vld [vmem:[#allocation2 + $0x10] sm:$0xff]
    %v802 = vld [vmem:[#allocation2 + $0x18] sm:$0xff]
    %v803 = vld [vmem:[#allocation2 + $0x20] sm:$0xff]
    %v804 = vld [vmem:[#allocation2 + $0x28] sm:$0xff]
    %v805 = vld [vmem:[#allocation2 + $0x30] sm:$0xff]
    %v806 = vld [vmem:[#allocation2 + $0x38] sm:$0xff]
    %v807 = vld [vmem:[#allocation6] sm:$0xff]
    %v808 = vld [vmem:[#allocation6 + $0x8] sm:$0xff]
    %v809 = vld [vmem:[#allocation6 + $0x10] sm:$0xff]
    %v810 = vld [vmem:[#allocation6 + $0x18] sm:$0xff]
    %v811 = vld [vmem:[#allocation6 + $0x20] sm:$0xff]
    %v812 = vld [vmem:[#allocation6 + $0x28] sm:$0xff]
    %v813 = vld [vmem:[#allocation6 + $0x30] sm:$0xff]
    %v814 = vld [vmem:[#allocation6 + $0x38] sm:$0xff]
    %v815 = vld [vmem:[#allocation6 + $0x40] sm:$0xff]
    %v816 = vld [vmem:[#allocation6 + $0x48] sm:$0xff]
    %v817 = vld [vmem:[#allocation6 + $0x50] sm:$0xff]
    %v818 = vld [vmem:[#allocation6 + $0x58] sm:$0xff]
    %v819 = vld [vmem:[#allocation6 + $0x60] sm:$0xff]
    %v820 = vld [vmem:[#allocation6 + $0x68] sm:$0xff]
    %v821 = vld [vmem:[#allocation6 + $0x70] sm:$0xff]
    %v822 = vld [vmem:[#allocation6 + $0x78] sm:$0xff]
    %v823 = vld [vmem:[#allocation6 + $0x80] sm:$0xff]
    %v824 = vld [vmem:[#allocation6 + $0x88] sm:$0xff]
    %v825 = vld [vmem:[#allocation6 + $0x90] sm:$0xff]
    %v826 = vld [vmem:[#allocation6 + $0x98] sm:$0xff]
    %v827 = vld [vmem:[#allocation6 + $0xa0] sm:$0xff]
    %v828 = vld [vmem:[#allocation6 + $0xa8] sm:$0xff]
    %v829 = vld [vmem:[#allocation6 + $0xb0] sm:$0xff]
    %v830 = vld [vmem:[#allocation6 + $0xb8] sm:$0xff]
    %v831 = vld [vmem:[#allocation6 + $0xc0] sm:$0xff]
    %v832 = vld [vmem:[#allocation6 + $0xc8] sm:$0xff]
    %v833 = vld [vmem:[#allocation6 + $0xd0] sm:$0xff]
    %v834 = vld [vmem:[#allocation6 + $0xd8] sm:$0xff]
    %v835 = vld [vmem:[#allocation6 + $0xe0] sm:$0xff]
    %v836 = vld [vmem:[#allocation6 + $0xe8] sm:$0xff]
    %v837 = vld [vmem:[#allocation6 + $0xf0] sm:$0xff]
    %v838 = vld [vmem:[#allocation6 + $0xf8] sm:$0xff]
    %v839 = vld [vmem:[#allocation6 + $0x100] sm:$0xff]
    %v840 = vld [vmem:[#allocation6 + $0x108] sm:$0xff]
    %v841 = vld [vmem:[#allocation6 + $0x110] sm:$0xff]
    %v842 = vld [vmem:[#allocation6 + $0x118] sm:$0xff]
    %v843 = vld [vmem:[#allocation6 + $0x120] sm:$0xff]
    %v844 = vld [vmem:[#allocation6 + $0x128] sm:$0xff]
    %v845 = vld [vmem:[#allocation6 + $0x130] sm:$0xff]
    %v846 = vld [vmem:[#allocation6 + $0x138] sm:$0xff]
    %v847 = vld [vmem:[#allocation6 + $0x140] sm:$0xff]
    %v848 = vld [vmem:[#allocation6 + $0x148] sm:$0xff]
    %v849 = vld [vmem:[#allocation6 + $0x150] sm:$0xff]
    %v850 = vld [vmem:[#allocation6 + $0x158] sm:$0xff]
    %v851 = vld [vmem:[#allocation6 + $0x160] sm:$0xff]
    %v852 = vld [vmem:[#allocation6 + $0x168] sm:$0xff]
    %v853 = vld [vmem:[#allocation6 + $0x170] sm:$0xff]
    %v854 = vld [vmem:[#allocation6 + $0x178] sm:$0xff]
    %v855 = vld [vmem:[#allocation6 + $0x180] sm:$0xff]
    %v856 = vld [vmem:[#allocation6 + $0x188] sm:$0xff]
    %v857 = vld [vmem:[#allocation6 + $0x190] sm:$0xff]
    %v858 = vld [vmem:[#allocation6 + $0x198] sm:$0xff]
    %v859 = vld [vmem:[#allocation6 + $0x1a0] sm:$0xff]
    %v860 = vld [vmem:[#allocation6 + $0x1a8] sm:$0xff]
    %v861 = vld [vmem:[#allocation6 + $0x1b0] sm:$0xff]
    %v862 = vld [vmem:[#allocation6 + $0x1b8] sm:$0xff]
    %v863 = vld [vmem:[#allocation6 + $0x1c0] sm:$0xff]
    %v864 = vld [vmem:[#allocation6 + $0x1c8] sm:$0xff]
    %v865 = vld [vmem:[#allocation6 + $0x1d0] sm:$0xff]
    %v866 = vld [vmem:[#allocation6 + $0x1d8] sm:$0xff]
    %v867 = vld [vmem:[#allocation6 + $0x1e0] sm:$0xff]
    %v868 = vld [vmem:[#allocation6 + $0x1e8] sm:$0xff]
    %v869 = vld [vmem:[#allocation6 + $0x1f0] sm:$0xff]
    %v870 = vld [vmem:[#allocation6 + $0x1f8] sm:$0xff]
    %v871 = vld [vmem:[#allocation6 + $0x200] sm:$0xff]
    %v872 = vld [vmem:[#allocation6 + $0x208] sm:$0xff]
    %v873 = vld [vmem:[#allocation6 + $0x210] sm:$0xff]
    %v874 = vld [vmem:[#allocation6 + $0x218] sm:$0xff]
    %v875 = vld [vmem:[#allocation6 + $0x220] sm:$0xff]
    %v876 = vld [vmem:[#allocation6 + $0x228] sm:$0xff]
    %v877 = vld [vmem:[#allocation6 + $0x230] sm:$0xff]
    %v878 = vld [vmem:[#allocation6 + $0x238] sm:$0xff]
    %v879 = vld [vmem:[#allocation6 + $0x240] sm:$0xff]
    %v880 = vld [vmem:[#allocation6 + $0x248] sm:$0xff]
    %v881 = vld [vmem:[#allocation6 + $0x250] sm:$0xff]
    %v882 = vld [vmem:[#allocation6 + $0x258] sm:$0xff]
    %v883 = vld [vmem:[#allocation6 + $0x260] sm:$0xff]
    %v884 = vld [vmem:[#allocation6 + $0x268] sm:$0xff]
    %v885 = vld [vmem:[#allocation6 + $0x270] sm:$0xff]
    %v886 = vld [vmem:[#allocation6 + $0x278] sm:$0xff]
    %v887 = vld [vmem:[#allocation6 + $0x280] sm:$0xff]
    %v888 = vld [vmem:[#allocation6 + $0x288] sm:$0xff]
    %v889 = vld [vmem:[#allocation6 + $0x290] sm:$0xff]
    %v890 = vld [vmem:[#allocation6 + $0x298] sm:$0xff]
    %v891 = vld [vmem:[#allocation6 + $0x2a0] sm:$0xff]
    %v892 = vld [vmem:[#allocation6 + $0x2a8] sm:$0xff]
    %v893 = vld [vmem:[#allocation6 + $0x2b0] sm:$0xff]
    %v894 = vld [vmem:[#allocation6 + $0x2b8] sm:$0xff]
    %v895 = vld [vmem:[#allocation6 + $0x2c0] sm:$0xff]
    %v896 = vld [vmem:[#allocation6 + $0x2c8] sm:$0xff]
    %v897 = vld [vmem:[#allocation6 + $0x2d0] sm:$0xff]
    %v898 = vld [vmem:[#allocation6 + $0x2d8] sm:$0xff]
    %v899 = vld [vmem:[#allocation6 + $0x2e0] sm:$0xff]
    %v900 = vld [vmem:[#allocation6 + $0x2e8] sm:$0xff]
    %v901 = vld [vmem:[#allocation6 + $0x2f0] sm:$0xff]
    %v902 = vld [vmem:[#allocation6 + $0x2f8] sm:$0xff]
    %v903 = vld [vmem:[#allocation6 + $0x300] sm:$0xff]
    %v904 = vld [vmem:[#allocation6 + $0x308] sm:$0xff]
    %v905 = vld [vmem:[#allocation6 + $0x310] sm:$0xff]
    %v906 = vld [vmem:[#allocation6 + $0x318] sm:$0xff]
    %v907 = vld [vmem:[#allocation6 + $0x320] sm:$0xff]
    %v908 = vld [vmem:[#allocation6 + $0x328] sm:$0xff]
    %v909 = vld [vmem:[#allocation6 + $0x330] sm:$0xff]
    %v910 = vld [vmem:[#allocation6 + $0x338] sm:$0xff]
    %v911 = vld [vmem:[#allocation6 + $0x340] sm:$0xff]
    %v912 = vld [vmem:[#allocation6 + $0x348] sm:$0xff]
    %v913 = vld [vmem:[#allocation6 + $0x350] sm:$0xff]
    %v914 = vld [vmem:[#allocation6 + $0x358] sm:$0xff]
    %v915 = vld [vmem:[#allocation6 + $0x360] sm:$0xff]
    %v916 = vld [vmem:[#allocation6 + $0x368] sm:$0xff]
    %v917 = vld [vmem:[#allocation6 + $0x370] sm:$0xff]
    %v918 = vld [vmem:[#allocation6 + $0x378] sm:$0xff]
    %v919 = vld [vmem:[#allocation6 + $0x380] sm:$0xff]
    %v920 = vld [vmem:[#allocation6 + $0x388] sm:$0xff]
    %v921 = vld [vmem:[#allocation6 + $0x390] sm:$0xff]
    %v922 = vld [vmem:[#allocation6 + $0x398] sm:$0xff]
    %v923 = vld [vmem:[#allocation6 + $0x3a0] sm:$0xff]
    %v924 = vld [vmem:[#allocation6 + $0x3a8] sm:$0xff]
    %v925 = vld [vmem:[#allocation6 + $0x3b0] sm:$0xff]
    %v926 = vld [vmem:[#allocation6 + $0x3b8] sm:$0xff]
    %v927 = vld [vmem:[#allocation6 + $0x3c0] sm:$0xff]
    %v928 = vld [vmem:[#allocation6 + $0x3c8] sm:$0xff]
    %v929 = vld [vmem:[#allocation6 + $0x3d0] sm:$0xff]
    %v930 = vld [vmem:[#allocation6 + $0x3d8] sm:$0xff]
    %v931 = vld [vmem:[#allocation6 + $0x3e0] sm:$0xff]
    %v932 = vld [vmem:[#allocation6 + $0x3e8] sm:$0xff]
    %v933 = vld [vmem:[#allocation6 + $0x3f0] sm:$0xff]
    %v934 = vld [vmem:[#allocation6 + $0x3f8] sm:$0xff]
    %v935 = vld [vmem:[%s5] sm:$0x1]
    %v937 = vlaneseq
    %v938 = vshrl.u32 %v937, 7
    %v939 = vsub.s32 0, %v938
    %v940 = vrot.slane %v935, %v939
    %942 = vmatprep.subr.mxu0 0.0
    %943 = vmatpush1.msra.mxu0 %v807
    %944 = vmatprep.subr.mxu0 0.0
    %945 = vmatpush1.msra.mxu0 %v808
    %946 = vmatprep.subr.mxu0 0.0
    %947 = vmatpush1.msra.mxu0 %v809
    %948 = vmatprep.subr.mxu0 0.0
    %949 = vmatpush1.msra.mxu0 %v810
    %950 = vmatprep.subr.mxu0 0.0
    %951 = vmatpush1.msra.mxu0 %v811
    %952 = vmatprep.subr.mxu0 0.0
    %953 = vmatpush1.msra.mxu0 %v812
    %954 = vmatprep.subr.mxu0 0.0
    %955 = vmatpush1.msra.mxu0 %v813
    %956 = vmatprep.subr.mxu0 0.0
    %957 = vmatpush1.msra.mxu0 %v814
    %958 = vmatprep.subr.mxu0 0.0
    %959 = vmatpush1.msra.mxu0 %v815
    %960 = vmatprep.subr.mxu0 0.0
    %961 = vmatpush1.msra.mxu0 %v816
    %962 = vmatprep.subr.mxu0 0.0
    %963 = vmatpush1.msra.mxu0 %v817
    %964 = vmatprep.subr.mxu0 0.0
    %965 = vmatpush1.msra.mxu0 %v818
    %966 = vmatprep.subr.mxu0 0.0
    %967 = vmatpush1.msra.mxu0 %v819
    %968 = vmatprep.subr.mxu0 0.0
    %969 = vmatpush1.msra.mxu0 %v820
    %970 = vmatprep.subr.mxu0 0.0
    %971 = vmatpush1.msra.mxu0 %v821
    %972 = vmatprep.subr.mxu0 0.0
    %973 = vmatpush1.msra.mxu0 %v822
    %974 = vmatprep.subr.mxu0 0.0
    %975 = vmatpush1.msra.mxu0 %v823
    %976 = vmatprep.subr.mxu0 0.0
    %977 = vmatpush1.msra.mxu0 %v824
    %978 = vmatprep.subr.mxu0 0.0
    %979 = vmatpush1.msra.mxu0 %v825
    %980 = vmatprep.subr.mxu0 0.0
    %981 = vmatpush1.msra.mxu0 %v826
    %982 = vmatprep.subr.mxu0 0.0
    %983 = vmatpush1.msra.mxu0 %v827
    %984 = vmatprep.subr.mxu0 0.0
    %985 = vmatpush1.msra.mxu0 %v828
    %986 = vmatprep.subr.mxu0 0.0
    %987 = vmatpush1.msra.mxu0 %v829
    %988 = vmatprep.subr.mxu0 0.0
    %989 = vmatpush1.msra.mxu0 %v830
    %990 = vmatprep.subr.mxu0 0.0
    %991 = vmatpush1.msra.mxu0 %v831
    %992 = vmatprep.subr.mxu0 0.0
    %993 = vmatpush1.msra.mxu0 %v832
    %994 = vmatprep.subr.mxu0 0.0
    %995 = vmatpush1.msra.mxu0 %v833
    %996 = vmatprep.subr.mxu0 0.0
    %997 = vmatpush1.msra.mxu0 %v834
    %998 = vmatprep.subr.mxu0 0.0
    %999 = vmatpush1.msra.mxu0 %v835
    %1000 = vmatprep.subr.mxu0 0.0
    %1001 = vmatpush1.msra.mxu0 %v836
    %1002 = vmatprep.subr.mxu0 0.0
    %1003 = vmatpush1.msra.mxu0 %v837
    %1004 = vmatprep.subr.mxu0 0.0
    %1005 = vmatpush1.msra.mxu0 %v838
    %1006 = vmatprep.mubr.f32.mxu0 %v800
    %1007 = vmatmul.mubr.f32.gmra.mrb[0].mxu0 %v799
    %v1008 = vpop.f32.mrb[0].mxu0
    %v1009 = vadd.f32 %v940, %v1008
    %v1010 = vpop.f32.mrb[0].mxu0
    %1011 = vdwg.mxu0
    %1012 = vmatprep.subr.mxu0 0.0
    %1013 = vmatpush1.msra.mxu0 %v839
    %1014 = vmatprep.subr.mxu0 0.0
    %1015 = vmatpush1.msra.mxu0 %v840
    %1016 = vmatprep.subr.mxu0 0.0
    %1017 = vmatpush1.msra.mxu0 %v841
    %1018 = vmatprep.subr.mxu0 0.0
    %1019 = vmatpush1.msra.mxu0 %v842
    %1020 = vmatprep.subr.mxu0 0.0
    %1021 = vmatpush1.msra.mxu0 %v843
    %1022 = vmatprep.subr.mxu0 0.0
    %1023 = vmatpush1.msra.mxu0 %v844
    %1024 = vmatprep.subr.mxu0 0.0
    %1025 = vmatpush1.msra.mxu0 %v845
    %1026 = vmatprep.subr.mxu0 0.0
    %1027 = vmatpush1.msra.mxu0 %v846
    %1028 = vmatprep.subr.mxu0 0.0
    %1029 = vmatpush1.msra.mxu0 %v847
    %1030 = vmatprep.subr.mxu0 0.0
    %1031 = vmatpush1.msra.mxu0 %v848
    %1032 = vmatprep.subr.mxu0 0.0
    %1033 = vmatpush1.msra.mxu0 %v849
    %1034 = vmatprep.subr.mxu0 0.0
    %1035 = vmatpush1.msra.mxu0 %v850
    %1036 = vmatprep.subr.mxu0 0.0
    %1037 = vmatpush1.msra.mxu0 %v851
    %1038 = vmatprep.subr.mxu0 0.0
    %1039 = vmatpush1.msra.mxu0 %v852
    %1040 = vmatprep.subr.mxu0 0.0
    %1041 = vmatpush1.msra.mxu0 %v853
    %1042 = vmatprep.subr.mxu0 0.0
    %1043 = vmatpush1.msra.mxu0 %v854
    %1044 = vmatprep.subr.mxu0 0.0
    %1045 = vmatpush1.msra.mxu0 %v855
    %1046 = vmatprep.subr.mxu0 0.0
    %1047 = vmatpush1.msra.mxu0 %v856
    %1048 = vmatprep.subr.mxu0 0.0
    %1049 = vmatpush1.msra.mxu0 %v857
    %1050 = vmatprep.subr.mxu0 0.0
    %1051 = vmatpush1.msra.mxu0 %v858
    %1052 = vmatprep.subr.mxu0 0.0
    %1053 = vmatpush1.msra.mxu0 %v859
    %1054 = vmatprep.subr.mxu0 0.0
    %1055 = vmatpush1.msra.mxu0 %v860
    %1056 = vmatprep.subr.mxu0 0.0
    %1057 = vmatpush1.msra.mxu0 %v861
    %1058 = vmatprep.subr.mxu0 0.0
    %1059 = vmatpush1.msra.mxu0 %v862
    %1060 = vmatprep.subr.mxu0 0.0
    %1061 = vmatpush1.msra.mxu0 %v863
    %1062 = vmatprep.subr.mxu0 0.0
    %1063 = vmatpush1.msra.mxu0 %v864
    %1064 = vmatprep.subr.mxu0 0.0
    %1065 = vmatpush1.msra.mxu0 %v865
    %1066 = vmatprep.subr.mxu0 0.0
    %1067 = vmatpush1.msra.mxu0 %v866
    %1068 = vmatprep.subr.mxu0 0.0
    %1069 = vmatpush1.msra.mxu0 %v867
    %1070 = vmatprep.subr.mxu0 0.0
    %1071 = vmatpush1.msra.mxu0 %v868
    %1072 = vmatprep.subr.mxu0 0.0
    %1073 = vmatpush1.msra.mxu0 %v869
    %1074 = vmatprep.subr.mxu0 0.0
    %1075 = vmatpush1.msra.mxu0 %v870
    %1076 = vmatprep.mubr.f32.mxu0 %v802
    %1077 = vmatmul.mubr.f32.gmra.mrb[0].mxu0 %v801
    %v1078 = vpop.f32.mrb[0].mxu0
    %v1079 = vadd.f32 %v1009, %v1078
    %v1080 = vpop.f32.mrb[0].mxu0
    %1081 = vdwg.mxu0
    %1082 = vmatprep.subr.mxu0 0.0
    %1083 = vmatpush1.msra.mxu0 %v871
    %1084 = vmatprep.subr.mxu0 0.0
    %1085 = vmatpush1.msra.mxu0 %v872
    %1086 = vmatprep.subr.mxu0 0.0
    %1087 = vmatpush1.msra.mxu0 %v873
    %1088 = vmatprep.subr.mxu0 0.0
    %1089 = vmatpush1.msra.mxu0 %v874
    %1090 = vmatprep.subr.mxu0 0.0
    %1091 = vmatpush1.msra.mxu0 %v875
    %1092 = vmatprep.subr.mxu0 0.0
    %1093 = vmatpush1.msra.mxu0 %v876
    %1094 = vmatprep.subr.mxu0 0.0
    %1095 = vmatpush1.msra.mxu0 %v877
    %1096 = vmatprep.subr.mxu0 0.0
    %1097 = vmatpush1.msra.mxu0 %v878
    %1098 = vmatprep.subr.mxu0 0.0
    %1099 = vmatpush1.msra.mxu0 %v879
    %1100 = vmatprep.subr.mxu0 0.0
    %1101 = vmatpush1.msra.mxu0 %v880
    %1102 = vmatprep.subr.mxu0 0.0
    %1103 = vmatpush1.msra.mxu0 %v881
    %1104 = vmatprep.subr.mxu0 0.0
    %1105 = vmatpush1.msra.mxu0 %v882
    %1106 = vmatprep.subr.mxu0 0.0
    %1107 = vmatpush1.msra.mxu0 %v883
    %1108 = vmatprep.subr.mxu0 0.0
    %1109 = vmatpush1.msra.mxu0 %v884
    %1110 = vmatprep.subr.mxu0 0.0
    %1111 = vmatpush1.msra.mxu0 %v885
    %1112 = vmatprep.subr.mxu0 0.0
    %1113 = vmatpush1.msra.mxu0 %v886
    %1114 = vmatprep.subr.mxu0 0.0
    %1115 = vmatpush1.msra.mxu0 %v887
    %1116 = vmatprep.subr.mxu0 0.0
    %1117 = vmatpush1.msra.mxu0 %v888
    %1118 = vmatprep.subr.mxu0 0.0
    %1119 = vmatpush1.msra.mxu0 %v889
    %1120 = vmatprep.subr.mxu0 0.0
    %1121 = vmatpush1.msra.mxu0 %v890
    %1122 = vmatprep.subr.mxu0 0.0
    %1123 = vmatpush1.msra.mxu0 %v891
    %1124 = vmatprep.subr.mxu0 0.0
    %1125 = vmatpush1.msra.mxu0 %v892
    %1126 = vmatprep.subr.mxu0 0.0
    %1127 = vmatpush1.msra.mxu0 %v893
    %1128 = vmatprep.subr.mxu0 0.0
    %1129 = vmatpush1.msra.mxu0 %v894
    %1130 = vmatprep.subr.mxu0 0.0
    %1131 = vmatpush1.msra.mxu0 %v895
    %1132 = vmatprep.subr.mxu0 0.0
    %1133 = vmatpush1.msra.mxu0 %v896
    %1134 = vmatprep.subr.mxu0 0.0
    %1135 = vmatpush1.msra.mxu0 %v897
    %1136 = vmatprep.subr.mxu0 0.0
    %1137 = vmatpush1.msra.mxu0 %v898
    %1138 = vmatprep.subr.mxu0 0.0
    %1139 = vmatpush1.msra.mxu0 %v899
    %1140 = vmatprep.subr.mxu0 0.0
    %1141 = vmatpush1.msra.mxu0 %v900
    %1142 = vmatprep.subr.mxu0 0.0
    %1143 = vmatpush1.msra.mxu0 %v901
    %1144 = vmatprep.subr.mxu0 0.0
    %1145 = vmatpush1.msra.mxu0 %v902
    %1146 = vmatprep.mubr.f32.mxu0 %v804
    %1147 = vmatmul.mubr.f32.gmra.mrb[0].mxu0 %v803
    %v1148 = vpop.f32.mrb[0].mxu0
    %v1149 = vadd.f32 %v1079, %v1148
    %v1150 = vpop.f32.mrb[0].mxu0
    %1151 = vdwg.mxu0
    %1152 = vmatprep.subr.mxu0 0.0
    %1153 = vmatpush1.msra.mxu0 %v903
    %1154 = vmatprep.subr.mxu0 0.0
    %1155 = vmatpush1.msra.mxu0 %v904
    %1156 = vmatprep.subr.mxu0 0.0
    %1157 = vmatpush1.msra.mxu0 %v905
    %1158 = vmatprep.subr.mxu0 0.0
    %1159 = vmatpush1.msra.mxu0 %v906
    %1160 = vmatprep.subr.mxu0 0.0
    %1161 = vmatpush1.msra.mxu0 %v907
    %1162 = vmatprep.subr.mxu0 0.0
    %1163 = vmatpush1.msra.mxu0 %v908
    %1164 = vmatprep.subr.mxu0 0.0
    %1165 = vmatpush1.msra.mxu0 %v909
    %1166 = vmatprep.subr.mxu0 0.0
    %1167 = vmatpush1.msra.mxu0 %v910
    %1168 = vmatprep.subr.mxu0 0.0
    %1169 = vmatpush1.msra.mxu0 %v911
    %1170 = vmatprep.subr.mxu0 0.0
    %1171 = vmatpush1.msra.mxu0 %v912
    %1172 = vmatprep.subr.mxu0 0.0
    %1173 = vmatpush1.msra.mxu0 %v913
    %1174 = vmatprep.subr.mxu0 0.0
    %1175 = vmatpush1.msra.mxu0 %v914
    %1176 = vmatprep.subr.mxu0 0.0
    %1177 = vmatpush1.msra.mxu0 %v915
    %1178 = vmatprep.subr.mxu0 0.0
    %1179 = vmatpush1.msra.mxu0 %v916
    %1180 = vmatprep.subr.mxu0 0.0
    %1181 = vmatpush1.msra.mxu0 %v917
    %1182 = vmatprep.subr.mxu0 0.0
    %1183 = vmatpush1.msra.mxu0 %v918
    %1184 = vmatprep.subr.mxu0 0.0
    %1185 = vmatpush1.msra.mxu0 %v919
    %1186 = vmatprep.subr.mxu0 0.0
    %1187 = vmatpush1.msra.mxu0 %v920
    %1188 = vmatprep.subr.mxu0 0.0
    %1189 = vmatpush1.msra.mxu0 %v921
    %1190 = vmatprep.subr.mxu0 0.0
    %1191 = vmatpush1.msra.mxu0 %v922
    %1192 = vmatprep.subr.mxu0 0.0
    %1193 = vmatpush1.msra.mxu0 %v923
    %1194 = vmatprep.subr.mxu0 0.0
    %1195 = vmatpush1.msra.mxu0 %v924
    %1196 = vmatprep.subr.mxu0 0.0
    %1197 = vmatpush1.msra.mxu0 %v925
    %1198 = vmatprep.subr.mxu0 0.0
    %1199 = vmatpush1.msra.mxu0 %v926
    %1200 = vmatprep.subr.mxu0 0.0
    %1201 = vmatpush1.msra.mxu0 %v927
    %1202 = vmatprep.subr.mxu0 0.0
    %1203 = vmatpush1.msra.mxu0 %v928
    %1204 = vmatprep.subr.mxu0 0.0
    %1205 = vmatpush1.msra.mxu0 %v929
    %1206 = vmatprep.subr.mxu0 0.0
    %1207 = vmatpush1.msra.mxu0 %v930
    %1208 = vmatprep.subr.mxu0 0.0
    %1209 = vmatpush1.msra.mxu0 %v931
    %1210 = vmatprep.subr.mxu0 0.0
    %1211 = vmatpush1.msra.mxu0 %v932
    %1212 = vmatprep.subr.mxu0 0.0
    %1213 = vmatpush1.msra.mxu0 %v933
    %1214 = vmatprep.subr.mxu0 0.0
    %1215 = vmatpush1.msra.mxu0 %v934
    %1216 = vmatprep.mubr.f32.mxu0 %v806
    %1217 = vmatmul.mubr.f32.gmra.mrb[0].mxu0 %v805
    %v1218 = vpop.f32.mrb[0].mxu0
    %v1219 = vadd.f32 %v1149, %v1218
    %v1220 = vpop.f32.mrb[0].mxu0
    %1221 = vdwg.mxu0
    %1222 = vst [vmem:[#allocation8] sm:$0xff] %v1219
    // Predicated region
    $region34: #{tpu_custom_call.1} parent=1 // pred_check
      _
    $region35: #{tpu_custom_call.1} parent=1 // pred_check_branch
      %1224 = sbr.rel (0) target = $region37
    $region36: #{tpu_custom_call.1} parent=1 // pred_region
      %s1226 = ssub.s32 128, 128
      %1227 = vsyncadd [#allocation5], %s1226
      %s1229 = sshll.u32 [#allocation8], 4
      %s1230 = int_to_ptr.vmem [resolvable:$true] %s1229
      %1232 = dma.vmem_to_hbm [thread:$0]  %s1230, 128, %s6, [#allocation5]
    $region37: #{tpu_custom_call.1} parent=1 // pred_fallthru
      _
    // Predicated region
    $region38: #{tpu_custom_call.1} parent=1 // pred_check
      _
    $region39: #{tpu_custom_call.1} parent=1 // pred_check_branch
      %1234 = sbr.rel (0) target = $region41
    $region40: #{tpu_custom_call.1} parent=1 // pred_region
      %1235 = dma.done [#allocation5], 128
    $region41: #{tpu_custom_call.1} parent=1 // pred_fallthru
      _
    %1236 = vsyncpa [#allocation4], 1
    %1237 = vsyncpa [#allocation7], 1
    %1238 = vsyncpa [#allocation5], 1

</llo_original>
